<compile_context>
chip_gen: v7x
topology: tpu7x:2x2x1
jax: 0.10.0
libtpu: 0.0.40
codegen_flags: <defaults>
</compile_context>

<pallas_src>
import jax
import jax.numpy as jnp
from jax.experimental import pallas as pl
from jax.experimental.pallas import tpu as pltpu

LANE = 128           # vreg lane width (feature dims padded to this)
ROW_ALIGN = 16       # bf16 sublane packing -> node-row counts padded to 16
MAX_ROW_TILE = 256   # destination-row tile ceiling
# TODO(synk): raise MAX_ROW_TILE to 512-1024 on v5e/v6e (128 MiB VMEM) for large
# graphs; keep 256 on v7x (64 MiB VMEM).


def _ceil_to(n, m):
    return ((n + m - 1) // m) * m


def _pad_rows(n):
    p = _ceil_to(n, ROW_ALIGN)
    if p > MAX_ROW_TILE:
        p = _ceil_to(p, MAX_ROW_TILE)
    return p


def _pick_tile_m(m_pad):
    """Largest row tile (multiple of ROW_ALIGN, <= MAX_ROW_TILE) giving a grid
    of >= 2 steps when possible, so both v7x TensorCores get work."""
    if m_pad <= ROW_ALIGN:
        return m_pad
    t = min(MAX_ROW_TILE, m_pad)
    t -= t % ROW_ALIGN
    while t >= ROW_ALIGN:
        if m_pad % t == 0 and (m_pad // t) >= 2:
            return t
        t -= ROW_ALIGN
    return m_pad


def _pad2d(x, rows, cols):
    out = jnp.zeros((rows, cols), jnp.float32)
    return out.at[: x.shape[0], : x.shape[1]].set(x.astype(jnp.float32))


# ---------------------------------------------------------------------------
# Fused per-(layer, destination node type) kernel
# ---------------------------------------------------------------------------
def _make_fused_layer_kernel(n_et, f_in, n_real, tile_m, with_act):
    """Ref layout: [a_0, x_0, ..., a_{n-1}, x_{n-1}, x_dst, w_stack, total_bias,
                    out(, out_act), stacked_scratch]"""

    def kernel(*refs):
        xs_ref = refs[-1]                        # [tile_m, (n_et+1)*f_in] bf16 scratch
        in_refs = refs[: 2 * n_et + 3]
        o_ref = refs[2 * n_et + 3]
        oa_ref = refs[2 * n_et + 4] if with_act else None
        xd_ref = in_refs[2 * n_et]
        ws_ref = in_refs[2 * n_et + 1]
        tb_ref = in_refs[2 * n_et + 2]

        # slot 0 of the stacked-feature scratch: self-loop source (x_dst)
        xs_ref[:, 0:f_in] = xd_ref[...]
        # slots 1..n_et: per-etype aggregation  A_e @ X_e  (bf16 in, f32 acc)
        for e in range(n_et):
            a_ref = in_refs[2 * e]
            x_ref = in_refs[2 * e + 1]
            ax = jnp.dot(a_ref[...], x_ref[...],
                         preferred_element_type=jnp.float32)
            xs_ref[:, (e + 1) * f_in:(e + 2) * f_in] = ax.astype(jnp.bfloat16)

        # One large-K MXU matmul against the stacked weights + folded bias:
        #   x_dst @ loop_W + sum_e (A_e @ X_e) @ W_e + (h_bias + sum_e b_e)
        acc = jnp.dot(xs_ref[...], ws_ref[...],
                      preferred_element_type=jnp.float32) + tb_ref[...]

        # Zero the padded destination rows so no bias junk leaks downstream.
        row = (pl.program_id(0) * tile_m
               + jax.lax.broadcasted_iota(jnp.int32, acc.shape, 0))
        acc = jnp.where(row < n_real, acc, 0.0)

        o_ref[...] = acc
        if with_act:
            # leaky_relu(0.01) fused into the epilogue; emitted in bf16 so it
            # feeds the next layer's MXU without a re-cast.
            oa_ref[...] = jnp.where(acc > 0.0, acc, 0.01 * acc).astype(oa_ref.dtype)

    return kernel


def fused_layer_dst(adj_list, xsrc_list, x_dst, w_stack, total_bias,
                    *, n_real, with_act):
    """adj_e: bf16 [Mp, Kp_e] (row-mean-normalized, zero-padded),
       xsrc_e: bf16 [Kp_e, F_in], x_dst: bf16 [Mp, F_in],
       w_stack: bf16 [(n_et+1)*F_in, F_out], total_bias: f32 [1, F_out]."""
    n_et = len(adj_list)
    m_pad, f_in = x_dst.shape
    k_stack, f_out = w_stack.shape
    tile_m = _pick_tile_m(m_pad)
    grid = (m_pad // tile_m,)

    operands, in_specs = [], []
    flops = 2 * m_pad * k_stack * f_out
    for a, x in zip(adj_list, xsrc_list):
        in_specs += [
            pl.BlockSpec((tile_m, a.shape[1]), lambda i: (i, 0)),  # adj row tile
            pl.BlockSpec(x.shape, lambda i: (0, 0)),               # src feats (resident)
        ]
        operands += [a, x]
        flops += 2 * m_pad * a.shape[1] * f_in
    in_specs += [
        pl.BlockSpec((tile_m, f_in), lambda i: (i, 0)),            # dst feats row tile
        pl.BlockSpec(w_stack.shape, lambda i: (0, 0)),             # stacked weights
        pl.BlockSpec(total_bias.shape, lambda i: (0, 0)),          # folded bias
    ]
    operands += [x_dst, w_stack, total_bias]
    # TODO(synk): single-buffer the grid-invariant operands (x_src, w_stack,
    # total_bias) via pipeline_mode=pl.Buffered(1) to halve their VMEM footprint
    # on v7x (64 MiB) once exercised at scale.
    # TODO(synk): for large source-node counts add a K ("arbitrary") grid axis
    # tiling adj [tile_m, tile_k] / x_src [tile_k, F_in] into a f32 accumulator
    # instead of keeping the full adjacency stripe + X_src resident.

    out_block = pl.BlockSpec((tile_m, f_out), lambda i: (i, 0))
    out_f32 = jax.ShapeDtypeStruct((m_pad, f_out), jnp.float32)
    if with_act:
        out_shape = (out_f32, jax.ShapeDtypeStruct((m_pad, f_out), jnp.bfloat16))
        out_specs = (out_block, out_block)
        out_bytes = m_pad * f_out * (4 + 2)
    else:
        out_shape = out_f32
        out_specs = out_block
        out_bytes = m_pad * f_out * 4

    in_bytes = sum(int(o.size) * o.dtype.itemsize for o in operands)
    cost = pl.CostEstimate(flops=flops, transcendentals=0,
                           bytes_accessed=in_bytes + out_bytes)

    # VMEM budget: default pipeline double-buffers every in/out block, plus the
    # single-buffered stacked-feature scratch.
    vmem = 0
    for a, x in zip(adj_list, xsrc_list):
        vmem += 2 * tile_m * a.shape[1] * 2 + 2 * int(x.size) * 2
    vmem += 2 * tile_m * f_in * 2            # x_dst tile
    vmem += 2 * int(w_stack.size) * 2        # stacked weights
    vmem += 2 * int(total_bias.size) * 4
    vmem += 2 * tile_m * f_out * 4           # pre-act output
    if with_act:
        vmem += 2 * tile_m * f_out * 2       # activated output
    vmem += tile_m * k_stack * 2             # scratch
    vmem_limit = int(min(96 * 2**20, max(32 * 2**20, 2 * vmem)))

    return pl.pallas_call(
        _make_fused_layer_kernel(n_et, f_in, n_real, tile_m, with_act),
        out_shape=out_shape,
        grid=grid,
        in_specs=in_specs,
        out_specs=out_specs,
        scratch_shapes=[pltpu.VMEM((tile_m, k_stack), jnp.bfloat16)],
        compiler_params=pltpu.CompilerParams(
            dimension_semantics=("parallel",),   # megacore sharding on v7x
            vmem_limit_bytes=vmem_limit),
        cost_estimate=cost,
    )(*operands)


# ---------------------------------------------------------------------------
# HeteroRGCNLayer / HeteroRGCN forward (thin glue on padded arrays)
# ---------------------------------------------------------------------------
def hetero_rgcn_layer_fused(adjs_p, canonical_etypes, feat_p, params_p, n_real,
                            *, with_act):
    by_dst = {}
    for ce in canonical_etypes:
        by_dst.setdefault(ce[2], []).append(ce)
    out = {}
    for dst, ces in by_dst.items():
        # Stack [loop_W; W_e...] once per (layer, dst) and fold all biases.
        # Folding assumes every real dst row has >=1 in-edge per incoming etype
        # (rows of the mean-normalized adjacency sum to 1), which the graph
        # construction guarantees; this matches the reference association.
        w_stack = jnp.concatenate(
            [params_p["loop_weight"]] + [params_p["weight"][ce[1]] for ce in ces],
            axis=0).astype(jnp.bfloat16)
        total_bias = params_p["h_bias"] + sum(params_p["bias"][ce[1]] for ce in ces)
        out[dst] = fused_layer_dst(
            [adjs_p[ce] for ce in ces],
            [feat_p[ce[0]] for ce in ces],
            feat_p[dst], w_stack, total_bias,
            n_real=n_real[dst], with_act=with_act)
    # TODO(synk): node types that never appear as a destination get no output,
    # matching the DGL multi_update_all semantics of the reference module.
    return out


def hetero_rgcn_forward_fused(adjs_p, canonical_etypes, embed_p, p1_p, p2_p,
                              n_real):
    # TODO(synk): at toy sizes the forward is launch/overhead bound; layer 1+2
    # per dst type could be fused into one kernel keeping h1_act in VMEM.
    l1 = hetero_rgcn_layer_fused(adjs_p, canonical_etypes, embed_p, p1_p,
                                 n_real, with_act=True)
    h1 = {k: v[0] for k, v in l1.items()}        # pre-activation f32 (for concat)
    h1_act = {k: v[1] for k, v in l1.items()}    # leaky_relu, bf16 (layer-2 input)
    h2 = hetero_rgcn_layer_fused(adjs_p, canonical_etypes, h1_act, p2_p,
                                 n_real, with_act=False)
    return h1, h2


# ---------------------------------------------------------------------------
# Deterministic parameter / graph construction
# ---------------------------------------------------------------------------
def xavier_uniform(key, shape, gain=1.0):
    fan_in, fan_out = shape
    a = gain * jnp.sqrt(6.0 / (fan_in + fan_out))
    return jax.random.uniform(key, shape, jnp.float32, -a, a)


if __name__ == "__main__":
    key = jax.random.PRNGKey(0)

    ntypes = ("user", "item")
    n_nodes = {"user": 12, "item": 10}
    canonical_etypes = (
        ("user", "follows", "user"),
        ("user", "clicks", "item"),
        ("item", "clicked_by", "user"),
    )
    in_size, hidden_size, out_size = 16, 32, 8

    # --- dense, row-mean-normalized adjacency per canonical edge type --------
    adjs = {}
    for ce in canonical_etypes:
        src, et, dst = ce
        key, sub = jax.random.split(key)
        a = (jax.random.uniform(sub, (n_nodes[dst], n_nodes[src])) < 0.3)
        a = a.astype(jnp.float32)
        rows = jnp.arange(n_nodes[dst])
        a = a.at[rows, rows % n_nodes[src]].set(1.0)   # every dst has >=1 in-edge
        adjs[ce] = a / jnp.sum(a, axis=1, keepdims=True)

    # --- layer parameters ------------------------------------------------------
    etypes = [ce[1] for ce in canonical_etypes]

    def make_layer_params(k, ins, outs):
        wd, bd = {}, {}
        for et in etypes:
            k, k1, k2 = jax.random.split(k, 3)
            wd[et] = xavier_uniform(k1, (ins, outs))                 # Linear.weight^T
            bd[et] = jax.random.uniform(k2, (1, outs), jnp.float32,
                                        -0.1, 0.1)                   # Linear.bias
        k, k3 = jax.random.split(k)
        lw = xavier_uniform(k3, (ins, outs), gain=jnp.sqrt(2.0))     # loop_weight
        hb = jnp.zeros((1, outs), jnp.float32)                       # h_bias (zeros_)
        return k, {"weight": wd, "bias": bd, "loop_weight": lw, "h_bias": hb}

    key, p1 = make_layer_params(key, in_size, hidden_size)
    key, p2 = make_layer_params(key, hidden_size, out_size)

    # --- node-type embeddings (xavier_uniform_) --------------------------------
    embed = {}
    for nt in ntypes:
        key, sub = jax.random.split(key)
        embed[nt] = xavier_uniform(sub, (n_nodes[nt], in_size))

    # --- pad lane/sublane-dense; bf16 for everything the MXU touches -----------
    n_pad = {nt: _pad_rows(n_nodes[nt]) for nt in ntypes}
    f_in = _ceil_to(in_size, LANE)
    f_hid = _ceil_to(hidden_size, LANE)
    f_out = _ceil_to(out_size, LANE)
    # TODO(synk): production feature dims should be native multiples of 128
    # (256 for the matmul N dim on v6e/v7x); padding 16/32/8 up to 128 wastes
    # most MXU lanes at these toy sizes.

    adjs_p = {ce: _pad2d(adjs[ce], n_pad[ce[2]], n_pad[ce[0]]).astype(jnp.bfloat16)
              for ce in canonical_etypes}
    embed_p = {nt: _pad2d(embed[nt], n_pad[nt], f_in).astype(jnp.bfloat16)
               for nt in ntypes}

    def pad_params(params, fi, fo):
        return {
            "weight": {et: _pad2d(w, fi, fo) for et, w in params["weight"].items()},
            "bias": {et: _pad2d(b, 1, fo) for et, b in params["bias"].items()},
            "loop_weight": _pad2d(params["loop_weight"], fi, fo),
            "h_bias": _pad2d(params["h_bias"], 1, fo),
        }

    p1_p = pad_params(p1, f_in, f_hid)
    p2_p = pad_params(p2, f_hid, f_out)

    # --- run fused Pallas forward ----------------------------------------------
    h1, h2 = hetero_rgcn_forward_fused(adjs_p, canonical_etypes, embed_p,
                                       p1_p, p2_p, n_nodes)
    out = {}
    for nt in h1:
        n = n_nodes[nt]
        out[nt] = jnp.concatenate(
            [embed[nt], h1[nt][:n, :hidden_size], h2[nt][:n, :out_size]],
            axis=1)
    out = jax.tree_util.tree_map(jax.block_until_ready, out)

    # --- pure-JAX f32 reference (original association A @ (X@W + b)) -----------
    def ref_layer(feat, params):
        agg = {}
        for (src, et, dst) in canonical_etypes:
            wh = feat[src] @ params["weight"][et] + params["bias"][et]
            c = adjs[(src, et, dst)] @ wh
            agg[dst] = c if dst not in agg else agg[dst] + c
        return {nt: agg[nt] + feat[nt] @ params["loop_weight"] + params["h_bias"]
                for nt in agg}

    r1 = ref_layer(embed, p1)
    ra = {k_: jax.nn.leaky_relu(v, 0.01) for k_, v in r1.items()}
    r2 = ref_layer(ra, p2)
    ref = {k_: jnp.concatenate([embed[k_], r1[k_], r2[k_]], axis=1) for k_ in r1}

    for nt in ntypes:
        assert out[nt].shape == (n_nodes[nt], in_size + hidden_size + out_size)
        # bf16 MXU inputs (f32 accumulation) -> relaxed tolerance vs f32 reference.
        assert jnp.allclose(out[nt], ref[nt], atol=5e-2, rtol=5e-2), nt

    print("KERNEL_OK")
</pallas_src>

<mosaic_0001>
module attributes {stable_mosaic.version = 11 : i64} {
  func.func @kernel(%arg0: i32, %arg1: memref<16x16xbf16, #tpu.memory_space<vmem>>, %arg2: memref<16x128xbf16, #tpu.memory_space<vmem>>, %arg3: memref<16x16xbf16, #tpu.memory_space<vmem>>, %arg4: memref<16x128xbf16, #tpu.memory_space<vmem>>, %arg5: memref<16x128xbf16, #tpu.memory_space<vmem>>, %arg6: memref<384x128xbf16, #tpu.memory_space<vmem>>, %arg7: memref<1x128xf32, #tpu.memory_space<vmem>>, %arg8: memref<16x128xf32, #tpu.memory_space<vmem>>, %arg9: memref<16x128xbf16, #tpu.memory_space<vmem>>, %arg10: memref<16x384xbf16, #tpu.memory_space<vmem>>) attributes {dimension_semantics = [#tpu.dimension_semantics<parallel>], iteration_bounds = array<i64: 1>, scalar_prefetch = 0 : i64, scratch_operands = 1 : i64, tpu.core_type = #tpu.core_type<tc>, window_params = [{transform_indices = @transform_0, window_bounds = array<i64: 16, 16>}, {pipeline_mode = #tpu.pipeline_mode<synchronous>, transform_indices = @transform_1, window_bounds = array<i64: 16, 128>}, {transform_indices = @transform_2, window_bounds = array<i64: 16, 16>}, {pipeline_mode = #tpu.pipeline_mode<synchronous>, transform_indices = @transform_3, window_bounds = array<i64: 16, 128>}, {transform_indices = @transform_4, window_bounds = array<i64: 16, 128>}, {pipeline_mode = #tpu.pipeline_mode<synchronous>, transform_indices = @transform_5, window_bounds = array<i64: 384, 128>}, {pipeline_mode = #tpu.pipeline_mode<synchronous>, transform_indices = @transform_6, window_bounds = array<i64: 1, 128>}, {transform_indices = @transform_7, window_bounds = array<i64: 16, 128>}, {transform_indices = @transform_8, window_bounds = array<i64: 16, 128>}]} {
    %c0 = arith.constant 0 : index
    %c0_0 = arith.constant 0 : index
    %0 = vector.load %arg5[%c0, %c0_0] : memref<16x128xbf16, #tpu.memory_space<vmem>>, vector<16x128xbf16>
    %c0_1 = arith.constant 0 : index
    %c0_2 = arith.constant 0 : index
    %1 = vector.load %arg10[%c0_1, %c0_2] : memref<16x384xbf16, #tpu.memory_space<vmem>>, vector<16x128xbf16>
    tpu.vector_store %arg10[%c0_1, %c0_2], %0 {strides = array<i32>} : memref<16x384xbf16, #tpu.memory_space<vmem>>, vector<16x128xbf16>,
    %c0_3 = arith.constant 0 : index
    %c0_4 = arith.constant 0 : index
    %2 = vector.load %arg1[%c0_3, %c0_4] : memref<16x16xbf16, #tpu.memory_space<vmem>>, vector<16x16xbf16>
    %c0_5 = arith.constant 0 : index
    %c0_6 = arith.constant 0 : index
    %3 = vector.load %arg2[%c0_5, %c0_6] : memref<16x128xbf16, #tpu.memory_space<vmem>>, vector<16x128xbf16>
    %cst = arith.constant dense<0.000000e+00> : vector<16x128xf32>
    %4 = tpu.matmul %2, %3, %cst {dimension_numbers = #tpu.dot_dimension_numbers<[1], [0], [0], [1], [0, 0, 1, 1], [], []>} : vector<16x16xbf16>, vector<16x128xbf16>, vector<16x128xf32> -> vector<16x128xf32>
    %5 = arith.truncf %4 : vector<16x128xf32> to vector<16x128xbf16>
    %c0_7 = arith.constant 0 : index
    %c128 = arith.constant 128 : index
    %6 = vector.load %arg10[%c0_7, %c128] : memref<16x384xbf16, #tpu.memory_space<vmem>>, vector<16x128xbf16>
    tpu.vector_store %arg10[%c0_7, %c128], %5 {strides = array<i32>} : memref<16x384xbf16, #tpu.memory_space<vmem>>, vector<16x128xbf16>,
    %c0_8 = arith.constant 0 : index
    %c0_9 = arith.constant 0 : index
    %7 = vector.load %arg3[%c0_8, %c0_9] : memref<16x16xbf16, #tpu.memory_space<vmem>>, vector<16x16xbf16>
    %c0_10 = arith.constant 0 : index
    %c0_11 = arith.constant 0 : index
    %8 = vector.load %arg4[%c0_10, %c0_11] : memref<16x128xbf16, #tpu.memory_space<vmem>>, vector<16x128xbf16>
    %cst_12 = arith.constant dense<0.000000e+00> : vector<16x128xf32>
    %9 = tpu.matmul %7, %8, %cst_12 {dimension_numbers = #tpu.dot_dimension_numbers<[1], [0], [0], [1], [0, 0, 1, 1], [], []>} : vector<16x16xbf16>, vector<16x128xbf16>, vector<16x128xf32> -> vector<16x128xf32>
    %10 = arith.truncf %9 : vector<16x128xf32> to vector<16x128xbf16>
    %c0_13 = arith.constant 0 : index
    %c256 = arith.constant 256 : index
    %11 = vector.load %arg10[%c0_13, %c256] : memref<16x384xbf16, #tpu.memory_space<vmem>>, vector<16x128xbf16>
    tpu.vector_store %arg10[%c0_13, %c256], %10 {strides = array<i32>} : memref<16x384xbf16, #tpu.memory_space<vmem>>, vector<16x128xbf16>,
    %c0_14 = arith.constant 0 : index
    %c0_15 = arith.constant 0 : index
    %12 = vector.load %arg10[%c0_14, %c0_15] : memref<16x384xbf16, #tpu.memory_space<vmem>>, vector<16x384xbf16>
    %c0_16 = arith.constant 0 : index
    %c0_17 = arith.constant 0 : index
    %13 = vector.load %arg6[%c0_16, %c0_17] : memref<384x128xbf16, #tpu.memory_space<vmem>>, vector<384x128xbf16>
    %cst_18 = arith.constant dense<0.000000e+00> : vector<16x128xf32>
    %14 = tpu.matmul %12, %13, %cst_18 {dimension_numbers = #tpu.dot_dimension_numbers<[1], [0], [0], [1], [0, 0, 1, 1], [], []>} : vector<16x384xbf16>, vector<384x128xbf16>, vector<16x128xf32> -> vector<16x128xf32>
    %c0_19 = arith.constant 0 : index
    %c0_20 = arith.constant 0 : index
    %15 = vector.load %arg7[%c0_19, %c0_20] : memref<1x128xf32, #tpu.memory_space<vmem>>, vector<1x128xf32>
    %16 = vector.broadcast %15 : vector<1x128xf32> to vector<16x128xf32>
    %17 = arith.addf %14, %16 : vector<16x128xf32>
    %c16_i32 = arith.constant 16 : i32
    %18 = arith.muli %arg0, %c16_i32 : i32
    %19 = tpu.iota {dimensions = array<i32: 0>} : vector<16x128xi32>
    %20 = vector.broadcast %18 : i32 to vector<16x128xi32>
    %21 = arith.addi %20, %19 : vector<16x128xi32>
    %c12_i32 = arith.constant 12 : i32
    %22 = vector.broadcast %c12_i32 : i32 to vector<16x128xi32>
    %23 = arith.cmpi slt, %21, %22 : vector<16x128xi32>
    %cst_21 = arith.constant 0.000000e+00 : f32
    %24 = vector.broadcast %cst_21 : f32 to vector<16x128xf32>
    %25 = arith.select %23, %17, %24 : vector<16x128xi1>, vector<16x128xf32>
    %c0_22 = arith.constant 0 : index
    %c0_23 = arith.constant 0 : index
    %26 = vector.load %arg8[%c0_22, %c0_23] : memref<16x128xf32, #tpu.memory_space<vmem>>, vector<16x128xf32>
    tpu.vector_store %arg8[%c0_22, %c0_23], %25 {strides = array<i32>} : memref<16x128xf32, #tpu.memory_space<vmem>>, vector<16x128xf32>,
    %cst_24 = arith.constant 0.000000e+00 : f32
    %27 = vector.broadcast %cst_24 : f32 to vector<16x128xf32>
    %28 = arith.cmpf ogt, %25, %27 : vector<16x128xf32>
    %cst_25 = arith.constant 0.00999999977 : f32
    %29 = vector.broadcast %cst_25 : f32 to vector<16x128xf32>
    %30 = arith.mulf %29, %25 : vector<16x128xf32>
    %31 = arith.select %28, %25, %30 : vector<16x128xi1>, vector<16x128xf32>
    %32 = arith.truncf %31 : vector<16x128xf32> to vector<16x128xbf16>
    %c0_26 = arith.constant 0 : index
    %c0_27 = arith.constant 0 : index
    %33 = vector.load %arg9[%c0_26, %c0_27] : memref<16x128xbf16, #tpu.memory_space<vmem>>, vector<16x128xbf16>
    tpu.vector_store %arg9[%c0_26, %c0_27], %32 {strides = array<i32>} : memref<16x128xbf16, #tpu.memory_space<vmem>>, vector<16x128xbf16>,
    return
  }
  func.func @transform_0(%arg0: i32) -> (i32, i32) {
    %c0_i32 = arith.constant 0 : i32
    %c0_i32_0 = arith.constant 0 : i32
    return %arg0, %c0_i32 : i32, i32
  }
  func.func @transform_1(%arg0: i32) -> (i32, i32) {
    %c0_i32 = arith.constant 0 : i32
    %c0_i32_0 = arith.constant 0 : i32
    %c0_i32_1 = arith.constant 0 : i32
    return %c0_i32, %c0_i32_0 : i32, i32
  }
  func.func @transform_2(%arg0: i32) -> (i32, i32) {
    %c0_i32 = arith.constant 0 : i32
    %c0_i32_0 = arith.constant 0 : i32
    return %arg0, %c0_i32 : i32, i32
  }
  func.func @transform_3(%arg0: i32) -> (i32, i32) {
    %c0_i32 = arith.constant 0 : i32
    %c0_i32_0 = arith.constant 0 : i32
    %c0_i32_1 = arith.constant 0 : i32
    return %c0_i32, %c0_i32_0 : i32, i32
  }
  func.func @transform_4(%arg0: i32) -> (i32, i32) {
    %c0_i32 = arith.constant 0 : i32
    %c0_i32_0 = arith.constant 0 : i32
    return %arg0, %c0_i32 : i32, i32
  }
  func.func @transform_5(%arg0: i32) -> (i32, i32) {
    %c0_i32 = arith.constant 0 : i32
    %c0_i32_0 = arith.constant 0 : i32
    %c0_i32_1 = arith.constant 0 : i32
    return %c0_i32, %c0_i32_0 : i32, i32
  }
  func.func @transform_6(%arg0: i32) -> (i32, i32) {
    %c0_i32 = arith.constant 0 : i32
    %c0_i32_0 = arith.constant 0 : i32
    %c0_i32_1 = arith.constant 0 : i32
    return %c0_i32, %c0_i32_0 : i32, i32
  }
  func.func @transform_7(%arg0: i32) -> (i32, i32) {
    %c0_i32 = arith.constant 0 : i32
    %c0_i32_0 = arith.constant 0 : i32
    return %arg0, %c0_i32 : i32, i32
  }
  func.func @transform_8(%arg0: i32) -> (i32, i32) {
    %c0_i32 = arith.constant 0 : i32
    %c0_i32_0 = arith.constant 0 : i32
    return %arg0, %c0_i32 : i32, i32
  }
}

</mosaic_0001>

<llo_original>
// kernel: tpu_custom_call.1
$region0: #{tpu_custom_call.1}
  #allocation0 [shape = 'u32[]', space=smem, size = 0x4, offset = 0x4, fixed_abs, tag = 'smem constant byte address 0x4 - core index']
  #allocation1 [shape = 'u32[144,128]{1,0:T(1,128)}', space=vmem, size = 0x12000, scoped, tag = 'internal scratch']
  #allocation2 [shape = 'bf16[16,384]{1,0:T(16,128)(2,1)}', space=vmem, size = 0x3000, scoped, tag = 'scratch operand']
  %s0 = inlined_call_operand.hbm [shape: bf16[16,16], index: 0, kind: input, shape index: {}]
  %s1 = inlined_call_operand.hbm [shape: bf16[16,128], index: 1, kind: input, shape index: {}]
  %s2 = inlined_call_operand.hbm [shape: bf16[16,16], index: 2, kind: input, shape index: {}]
  %s3 = inlined_call_operand.vmem [shape: bf16[16,128], index: 3, kind: input, shape index: {}]
  %s4 = inlined_call_operand.hbm [shape: bf16[16,128], index: 4, kind: input, shape index: {}]
  %s5 = inlined_call_operand.hbm [shape: bf16[384,128], index: 5, kind: input, shape index: {}]
  %s6 = inlined_call_operand.vmem [shape: f32[1,128], index: 6, kind: input, shape index: {}]
  %s7 = inlined_call_operand.hbm [shape: f32[16,128], index: 7, kind: output, shape index: {0}]
  %s8 = inlined_call_operand.hbm [shape: bf16[16,128], index: 8, kind: output, shape index: {1}]
  %9 = xla_tuple %s7, %s8
  %s10 = sld [smem:[#allocation0]]
  $region66: #{tpu_custom_call.1} parent=0
    _
  %s12 = ssub.s32 1, %s10
  %s13 = scalar_select 0, %s12, %s10
  $region1: #{tpu_custom_call.1} parent=0
    #allocation3 [shape = 'u8[4096]{0}', space=vmem, size = 0x1000, scoped, tag = 'input window, operand 0, single buffered']
    #allocation4 [shape = 's32[1]{0}', space=sflag, size = 0x4, scoped, tag = 'scoped memory for tpu_custom_call.1']
    #allocation5 [shape = 's32[1]{0}', space=sflag, size = 0x4, scoped, tag = 'scoped memory for tpu_custom_call.1']
    #allocation6 [shape = 'u8[4096]{0}', space=vmem, size = 0x1000, scoped, tag = 'input window, operand 1, single buffered']
    #allocation7 [shape = 's32[1]{0}', space=sflag, size = 0x4, scoped, tag = 'scoped memory for tpu_custom_call.1']
    #allocation8 [shape = 'u8[4096]{0}', space=vmem, size = 0x1000, scoped, tag = 'input window, operand 2, single buffered']
    #allocation9 [shape = 'u8[4096]{0}', space=vmem, size = 0x1000, scoped, tag = 'input window, operand 4, single buffered']
    #allocation10 [shape = 's32[1]{0}', space=sflag, size = 0x4, scoped, tag = 'scoped memory for tpu_custom_call.1']
    #allocation11 [shape = 'u8[98304]{0}', space=vmem, size = 0x18000, scoped, tag = 'input window, operand 5, single buffered']
    #allocation12 [shape = 'u8[8192]{0}', space=vmem, size = 0x2000, scoped, tag = 'output window, operand 0, single buffered']
    #allocation13 [shape = 'u8[4096]{0}', space=vmem, size = 0x1000, scoped, tag = 'output window, operand 1, single buffered']
    #allocation14 [shape = 's32[1]{0}', space=sflag, size = 0x4, scoped, tag = 'scoped memory for tpu_custom_call.1']
    %14 = vsyncpa [#allocation4], 0
    %15 = vsyncpa [#allocation7], 0
    %16 = vsyncpa [#allocation10], 0
    %17 = vsyncpa [#allocation5], 0
    %18 = vsyncpa [#allocation14], 0
    // Predicated region
    $region2: #{tpu_custom_call.1} parent=1 // pred_check
      _
    $region3: #{tpu_custom_call.1} parent=1 // pred_check_branch
      %20 = sbr.rel (0) target = $region5
    $region4: #{tpu_custom_call.1} parent=1 // pred_region
      %s22 = ssub.s32 128, 128
      %23 = vsyncadd [#allocation4], %s22
      %s24 = sshll.u32 [#allocation3], 4
      %s25 = int_to_ptr.vmem [resolvable:$true] %s24
      %30 = dma.hbm_to_vmem [thread:$0]  %s0, 128, %s25, [#allocation4], 64, 64, 4
    $region5: #{tpu_custom_call.1} parent=1 // pred_fallthru
      _
    // Predicated region
    $region6: #{tpu_custom_call.1} parent=1 // pred_check
      _
    $region7: #{tpu_custom_call.1} parent=1 // pred_check_branch
      %32 = sbr.rel (0) target = $region9
    $region8: #{tpu_custom_call.1} parent=1 // pred_region
      %s34 = ssub.s32 128, 128
      %35 = vsyncadd [#allocation7], %s34
      %s36 = sshll.u32 [#allocation6], 4
      %s37 = int_to_ptr.vmem [resolvable:$true] %s36
      %42 = dma.hbm_to_vmem [thread:$0]  %s1, 128, %s37, [#allocation7], 64, 64, 4
    $region9: #{tpu_custom_call.1} parent=1 // pred_fallthru
      _
    // Predicated region
    $region10: #{tpu_custom_call.1} parent=1 // pred_check
      _
    $region11: #{tpu_custom_call.1} parent=1 // pred_check_branch
      %44 = sbr.rel (0) target = $region13
    $region12: #{tpu_custom_call.1} parent=1 // pred_region
      %s46 = ssub.s32 128, 128
      %47 = vsyncadd [#allocation7], %s46
      %s48 = sshll.u32 [#allocation8], 4
      %s49 = int_to_ptr.vmem [resolvable:$true] %s48
      %54 = dma.hbm_to_vmem [thread:$0]  %s2, 128, %s49, [#allocation7], 64, 64, 4
    $region13: #{tpu_custom_call.1} parent=1 // pred_fallthru
      _
    // Predicated region
    $region14: #{tpu_custom_call.1} parent=1 // pred_check
      _
    $region15: #{tpu_custom_call.1} parent=1 // pred_check_branch
      %56 = sbr.rel (0) target = $region17
    $region16: #{tpu_custom_call.1} parent=1 // pred_region
      _
    $region17: #{tpu_custom_call.1} parent=1 // pred_fallthru
      _
    // Predicated region
    $region18: #{tpu_custom_call.1} parent=1 // pred_check
      _
    $region19: #{tpu_custom_call.1} parent=1 // pred_check_branch
      %58 = sbr.rel (0) target = $region21
    $region20: #{tpu_custom_call.1} parent=1 // pred_region
      %s60 = ssub.s32 128, 128
      %61 = vsyncadd [#allocation10], %s60
      %s62 = sshll.u32 [#allocation9], 4
      %s63 = int_to_ptr.vmem [resolvable:$true] %s62
      %68 = dma.hbm_to_vmem [thread:$0]  %s4, 128, %s63, [#allocation10], 64, 64, 4
    $region21: #{tpu_custom_call.1} parent=1 // pred_fallthru
      _
    // Predicated region
    $region22: #{tpu_custom_call.1} parent=1 // pred_check
      _
    $region23: #{tpu_custom_call.1} parent=1 // pred_check_branch
      %70 = sbr.rel (0) target = $region25
    $region24: #{tpu_custom_call.1} parent=1 // pred_region
      %s72 = ssub.s32 3072, 3072
      %73 = vsyncadd [#allocation10], %s72
      %s74 = sshll.u32 [#allocation11], 4
      %s75 = int_to_ptr.vmem [resolvable:$true] %s74
      %80 = dma.hbm_to_vmem [thread:$0]  %s5, 3072, %s75, [#allocation10], 64, 64, 4
    $region25: #{tpu_custom_call.1} parent=1 // pred_fallthru
      _
    // Predicated region
    $region26: #{tpu_custom_call.1} parent=1 // pred_check
      _
    $region27: #{tpu_custom_call.1} parent=1 // pred_check_branch
      %82 = sbr.rel (0) target = $region29
    $region28: #{tpu_custom_call.1} parent=1 // pred_region
      _
    $region29: #{tpu_custom_call.1} parent=1 // pred_fallthru
      _
    // Predicated region
    $region30: #{tpu_custom_call.1} parent=1 // pred_check
      _
    $region31: #{tpu_custom_call.1} parent=1 // pred_check_branch
      %84 = sbr.rel (0) target = $region33
    $region32: #{tpu_custom_call.1} parent=1 // pred_region
      %85 = dma.done [#allocation4], 128
    $region33: #{tpu_custom_call.1} parent=1 // pred_fallthru
      _
    // Predicated region
    $region34: #{tpu_custom_call.1} parent=1 // pred_check
      _
    $region35: #{tpu_custom_call.1} parent=1 // pred_check_branch
      %87 = sbr.rel (0) target = $region37
    $region36: #{tpu_custom_call.1} parent=1 // pred_region
      %88 = dma.done [#allocation7], 128
    $region37: #{tpu_custom_call.1} parent=1 // pred_fallthru
      _
    // Predicated region
    $region38: #{tpu_custom_call.1} parent=1 // pred_check
      _
    $region39: #{tpu_custom_call.1} parent=1 // pred_check_branch
      %90 = sbr.rel (0) target = $region41
    $region40: #{tpu_custom_call.1} parent=1 // pred_region
      %91 = dma.done [#allocation7], 128
    $region41: #{tpu_custom_call.1} parent=1 // pred_fallthru
      _
    // Predicated region
    $region42: #{tpu_custom_call.1} parent=1 // pred_check
      _
    $region43: #{tpu_custom_call.1} parent=1 // pred_check_branch
      %93 = sbr.rel (0) target = $region45
    $region44: #{tpu_custom_call.1} parent=1 // pred_region
      %94 = dma.done [#allocation10], 128
    $region45: #{tpu_custom_call.1} parent=1 // pred_fallthru
      _
    // Predicated region
    $region46: #{tpu_custom_call.1} parent=1 // pred_check
      _
    $region47: #{tpu_custom_call.1} parent=1 // pred_check_branch
      %96 = sbr.rel (0) target = $region49
    $region48: #{tpu_custom_call.1} parent=1 // pred_region
      %97 = dma.done [#allocation10], 3072
    $region49: #{tpu_custom_call.1} parent=1 // pred_fallthru
      _
    %v99 = vld [vmem:[#allocation9] sm:$0xf]
    %v100 = vld [vmem:[#allocation9 + $0x4] sm:$0xf]
    %v103 = vunpack.c.l.b16 %v99
    %v104 = vunpack.c.l.b16 %v100
    %v105 = vpack.c.b16 %v104, %v103
    %107 = vst [vmem:[#allocation2] sm:$0xff] %v105
    %v108 = vld [vmem:[#allocation3] sm:$0xf]
    %v109 = vld [vmem:[#allocation3 + $0x4] sm:$0xf]
    %v110 = vld [vmem:[#allocation6] sm:$0xf]
    %v111 = vld [vmem:[#allocation6 + $0x4] sm:$0xf]
    %v114 = vunpack.c.l.b16 %v108
    %v115 = vunpack.c.l.b16 %v109
    %v116 = vpack.c.b16 %v115, %v114
    %v119 = vunpack.c.l.b16 %v110
    %v120 = vunpack.c.l.b16 %v111
    %v121 = vpack.c.b16 %v120, %v119
    %vm123 = vcmask 130048
    %v125 = vsel %vm123, %v116, 0
    %127 = vmatprep.subr.bf16.mxu0 0
    %128 = vmatpush1.bf16.msra.mxu0 %v121
    %129 = vmatprep.subr.bf16.mxu0 0
    %130 = vmatpush1.bf16.msra.mxu0 0
    %131 = vmatprep.subr.bf16.mxu0 0
    %132 = vmatpush1.bf16.msra.mxu0 0
    %133 = vmatprep.subr.bf16.mxu0 0
    %134 = vmatpush1.bf16.msra.mxu0 0
    %135 = vmatprep.subr.bf16.mxu0 0
    %136 = vmatpush1.bf16.msra.mxu0 0
    %137 = vmatprep.subr.bf16.mxu0 0
    %138 = vmatpush1.bf16.msra.mxu0 0
    %139 = vmatprep.subr.bf16.mxu0 0
    %140 = vmatpush1.bf16.msra.mxu0 0
    %141 = vmatprep.subr.bf16.mxu0 0
    %142 = vmatpush1.bf16.msra.mxu0 0
    %143 = vmatprep.subr.bf16.mxu0 0
    %144 = vmatpush1.bf16.msra.mxu0 0
    %145 = vmatprep.subr.bf16.mxu0 0
    %146 = vmatpush1.bf16.msra.mxu0 0
    %147 = vmatprep.subr.bf16.mxu0 0
    %148 = vmatpush1.bf16.msra.mxu0 0
    %149 = vmatprep.subr.bf16.mxu0 0
    %150 = vmatpush1.bf16.msra.mxu0 0
    %151 = vmatprep.subr.bf16.mxu0 0
    %152 = vmatpush1.bf16.msra.mxu0 0
    %153 = vmatprep.subr.bf16.mxu0 0
    %154 = vmatpush1.bf16.msra.mxu0 0
    %155 = vmatprep.subr.bf16.mxu0 0
    %156 = vmatpush1.bf16.msra.mxu0 0
    %157 = vmatprep.subr.bf16.mxu0 0
    %158 = vmatpush1.bf16.msra.mxu0 0
    %159 = vmatprep.mubr.bf16.mxu0 0
    %160 = vmatmul.mubr.bf16.gmra.mrb[0].mxu0 %v125
    %v161 = vpop.f32.mrb[0].mxu0
    %v162 = vadd.f32 0.0, %v161
    %v163 = vpop.f32.mrb[0].mxu0
    %v164 = vpop.f32.mrb[0].mxu0
    %v165 = vadd.f32 0.0, %v164
    %v166 = vpop.f32.mrb[0].mxu0
    %167 = vdwg.mxu0
    %v168 = vpack.c.bf16 %v165, %v162
    %169 = vst [vmem:[#allocation2 + $0x8] sm:$0xff] %v168
    %v170 = vld [vmem:[#allocation8] sm:$0xf]
    %v171 = vld [vmem:[#allocation8 + $0x4] sm:$0xf]
    %v172 = vld [vmem:[%s3] sm:$0xf]
    %v173 = vld [vmem:[%s3 + $0x4] sm:$0xf]
    %v176 = vunpack.c.l.b16 %v170
    %v177 = vunpack.c.l.b16 %v171
    %v178 = vpack.c.b16 %v177, %v176
    %v181 = vunpack.c.l.b16 %v172
    %v182 = vunpack.c.l.b16 %v173
    %v183 = vpack.c.b16 %v182, %v181
    %v186 = vsel %vm123, %v178, 0
    %188 = vmatprep.subr.bf16.mxu0 0
    %189 = vmatpush1.bf16.msra.mxu0 %v183
    %190 = vmatprep.subr.bf16.mxu0 0
    %191 = vmatpush1.bf16.msra.mxu0 0
    %192 = vmatprep.subr.bf16.mxu0 0
    %193 = vmatpush1.bf16.msra.mxu0 0
    %194 = vmatprep.subr.bf16.mxu0 0
    %195 = vmatpush1.bf16.msra.mxu0 0
    %196 = vmatprep.subr.bf16.mxu0 0
    %197 = vmatpush1.bf16.msra.mxu0 0
    %198 = vmatprep.subr.bf16.mxu0 0
    %199 = vmatpush1.bf16.msra.mxu0 0
    %200 = vmatprep.subr.bf16.mxu0 0
    %201 = vmatpush1.bf16.msra.mxu0 0
    %202 = vmatprep.subr.bf16.mxu0 0
    %203 = vmatpush1.bf16.msra.mxu0 0
    %204 = vmatprep.subr.bf16.mxu0 0
    %205 = vmatpush1.bf16.msra.mxu0 0
    %206 = vmatprep.subr.bf16.mxu0 0
    %207 = vmatpush1.bf16.msra.mxu0 0
    %208 = vmatprep.subr.bf16.mxu0 0
    %209 = vmatpush1.bf16.msra.mxu0 0
    %210 = vmatprep.subr.bf16.mxu0 0
    %211 = vmatpush1.bf16.msra.mxu0 0
    %212 = vmatprep.subr.bf16.mxu0 0
    %213 = vmatpush1.bf16.msra.mxu0 0
    %214 = vmatprep.subr.bf16.mxu0 0
    %215 = vmatpush1.bf16.msra.mxu0 0
    %216 = vmatprep.subr.bf16.mxu0 0
    %217 = vmatpush1.bf16.msra.mxu0 0
    %218 = vmatprep.subr.bf16.mxu0 0
    %219 = vmatpush1.bf16.msra.mxu0 0
    %220 = vmatprep.mubr.bf16.mxu0 0
    %221 = vmatmul.mubr.bf16.gmra.mrb[0].mxu0 %v186
    %v222 = vpop.f32.mrb[0].mxu0
    %v223 = vadd.f32 0.0, %v222
    %v224 = vpop.f32.mrb[0].mxu0
    %v225 = vpop.f32.mrb[0].mxu0
    %v226 = vadd.f32 0.0, %v225
    %v227 = vpop.f32.mrb[0].mxu0
    %228 = vdwg.mxu0
    %v229 = vpack.c.bf16 %v226, %v223
    %230 = vst [vmem:[#allocation2 + $0x10] sm:$0xff] %v229
    %v231 = vld [vmem:[#allocation2] sm:$0xff]
    %v232 = vld [vmem:[#allocation2 + $0x8] sm:$0xff]
    %v233 = vld [vmem:[#allocation2 + $0x10] sm:$0xff]
    %v234 = vld [vmem:[#allocation11] sm:$0xf]
    %v235 = vld [vmem:[#allocation11 + $0x4] sm:$0xf]
    %v236 = vld [vmem:[#allocation11 + $0x8] sm:$0xf]
    %v237 = vld [vmem:[#allocation11 + $0xc] sm:$0xf]
    %v238 = vld [vmem:[#allocation11 + $0x10] sm:$0xf]
    %v239 = vld [vmem:[#allocation11 + $0x14] sm:$0xf]
    %v240 = vld [vmem:[#allocation11 + $0x18] sm:$0xf]
    %v241 = vld [vmem:[#allocation11 + $0x1c] sm:$0xf]
    %v242 = vld [vmem:[#allocation11 + $0x20] sm:$0xf]
    %v243 = vld [vmem:[#allocation11 + $0x24] sm:$0xf]
    %v244 = vld [vmem:[#allocation11 + $0x28] sm:$0xf]
    %v245 = vld [vmem:[#allocation11 + $0x2c] sm:$0xf]
    %v246 = vld [vmem:[#allocation11 + $0x30] sm:$0xf]
    %v247 = vld [vmem:[#allocation11 + $0x34] sm:$0xf]
    %v248 = vld [vmem:[#allocation11 + $0x38] sm:$0xf]
    %v249 = vld [vmem:[#allocation11 + $0x3c] sm:$0xf]
    %v250 = vld [vmem:[#allocation11 + $0x40] sm:$0xf]
    %v251 = vld [vmem:[#allocation11 + $0x44] sm:$0xf]
    %v252 = vld [vmem:[#allocation11 + $0x48] sm:$0xf]
    %v253 = vld [vmem:[#allocation11 + $0x4c] sm:$0xf]
    %v254 = vld [vmem:[#allocation11 + $0x50] sm:$0xf]
    %v255 = vld [vmem:[#allocation11 + $0x54] sm:$0xf]
    %v256 = vld [vmem:[#allocation11 + $0x58] sm:$0xf]
    %v257 = vld [vmem:[#allocation11 + $0x5c] sm:$0xf]
    %v258 = vld [vmem:[#allocation11 + $0x60] sm:$0xf]
    %v259 = vld [vmem:[#allocation11 + $0x64] sm:$0xf]
    %v260 = vld [vmem:[#allocation11 + $0x68] sm:$0xf]
    %v261 = vld [vmem:[#allocation11 + $0x6c] sm:$0xf]
    %v262 = vld [vmem:[#allocation11 + $0x70] sm:$0xf]
    %v263 = vld [vmem:[#allocation11 + $0x74] sm:$0xf]
    %v264 = vld [vmem:[#allocation11 + $0x78] sm:$0xf]
    %v265 = vld [vmem:[#allocation11 + $0x7c] sm:$0xf]
    %v266 = vld [vmem:[#allocation11 + $0x80] sm:$0xf]
    %v267 = vld [vmem:[#allocation11 + $0x84] sm:$0xf]
    %v268 = vld [vmem:[#allocation11 + $0x88] sm:$0xf]
    %v269 = vld [vmem:[#allocation11 + $0x8c] sm:$0xf]
    %v270 = vld [vmem:[#allocation11 + $0x90] sm:$0xf]
    %v271 = vld [vmem:[#allocation11 + $0x94] sm:$0xf]
    %v272 = vld [vmem:[#allocation11 + $0x98] sm:$0xf]
    %v273 = vld [vmem:[#allocation11 + $0x9c] sm:$0xf]
    %v274 = vld [vmem:[#allocation11 + $0xa0] sm:$0xf]
    %v275 = vld [vmem:[#allocation11 + $0xa4] sm:$0xf]
    %v276 = vld [vmem:[#allocation11 + $0xa8] sm:$0xf]
    %v277 = vld [vmem:[#allocation11 + $0xac] sm:$0xf]
    %v278 = vld [vmem:[#allocation11 + $0xb0] sm:$0xf]
    %v279 = vld [vmem:[#allocation11 + $0xb4] sm:$0xf]
    %v280 = vld [vmem:[#allocation11 + $0xb8] sm:$0xf]
    %v281 = vld [vmem:[#allocation11 + $0xbc] sm:$0xf]
    %v282 = vld [vmem:[%s6] sm:$0x1]
    %v284 = vlaneseq
    %v285 = vshrl.u32 %v284, 7
    %v286 = vsub.s32 0, %v285
    %v287 = vrot.slane %v282, %v286
    %v337 = vunpack.c.l.b16 %v234
    %v338 = vunpack.c.l.b16 %v235
    %v339 = vunpack.c.l.b16 %v236
    %v340 = vunpack.c.l.b16 %v237
    %v341 = vunpack.c.l.b16 %v238
    %v342 = vunpack.c.l.b16 %v239
    %v343 = vunpack.c.l.b16 %v240
    %v344 = vunpack.c.l.b16 %v241
    %v345 = vunpack.c.l.b16 %v242
    %v346 = vunpack.c.l.b16 %v243
    %v347 = vunpack.c.l.b16 %v244
    %v348 = vunpack.c.l.b16 %v245
    %v349 = vunpack.c.l.b16 %v246
    %v350 = vunpack.c.l.b16 %v247
    %v351 = vunpack.c.l.b16 %v248
    %v352 = vunpack.c.l.b16 %v249
    %v353 = vunpack.c.l.b16 %v250
    %v354 = vunpack.c.l.b16 %v251
    %v355 = vunpack.c.l.b16 %v252
    %v356 = vunpack.c.l.b16 %v253
    %v357 = vunpack.c.l.b16 %v254
    %v358 = vunpack.c.l.b16 %v255
    %v359 = vunpack.c.l.b16 %v256
    %v360 = vunpack.c.l.b16 %v257
    %v361 = vunpack.c.l.b16 %v258
    %v362 = vunpack.c.l.b16 %v259
    %v363 = vunpack.c.l.b16 %v260
    %v364 = vunpack.c.l.b16 %v261
    %v365 = vunpack.c.l.b16 %v262
    %v366 = vunpack.c.l.b16 %v263
    %v367 = vunpack.c.l.b16 %v264
    %v368 = vunpack.c.l.b16 %v265
    %v369 = vunpack.c.l.b16 %v266
    %v370 = vunpack.c.l.b16 %v267
    %v371 = vunpack.c.l.b16 %v268
    %v372 = vunpack.c.l.b16 %v269
    %v373 = vunpack.c.l.b16 %v270
    %v374 = vunpack.c.l.b16 %v271
    %v375 = vunpack.c.l.b16 %v272
    %v376 = vunpack.c.l.b16 %v273
    %v377 = vunpack.c.l.b16 %v274
    %v378 = vunpack.c.l.b16 %v275
    %v379 = vunpack.c.l.b16 %v276
    %v380 = vunpack.c.l.b16 %v277
    %v381 = vunpack.c.l.b16 %v278
    %v382 = vunpack.c.l.b16 %v279
    %v383 = vunpack.c.l.b16 %v280
    %v384 = vunpack.c.l.b16 %v281
    %v385 = vpack.c.b16 %v338, %v337
    %v386 = vpack.c.b16 %v340, %v339
    %v387 = vpack.c.b16 %v342, %v341
    %v388 = vpack.c.b16 %v344, %v343
    %v389 = vpack.c.b16 %v346, %v345
    %v390 = vpack.c.b16 %v348, %v347
    %v391 = vpack.c.b16 %v350, %v349
    %v392 = vpack.c.b16 %v352, %v351
    %v393 = vpack.c.b16 %v354, %v353
    %v394 = vpack.c.b16 %v356, %v355
    %v395 = vpack.c.b16 %v358, %v357
    %v396 = vpack.c.b16 %v360, %v359
    %v397 = vpack.c.b16 %v362, %v361
    %v398 = vpack.c.b16 %v364, %v363
    %v399 = vpack.c.b16 %v366, %v365
    %v400 = vpack.c.b16 %v368, %v367
    %v401 = vpack.c.b16 %v370, %v369
    %v402 = vpack.c.b16 %v372, %v371
    %v403 = vpack.c.b16 %v374, %v373
    %v404 = vpack.c.b16 %v376, %v375
    %v405 = vpack.c.b16 %v378, %v377
    %v406 = vpack.c.b16 %v380, %v379
    %v407 = vpack.c.b16 %v382, %v381
    %v408 = vpack.c.b16 %v384, %v383
    %433 = vmatprep.subr.bf16.mxu0 0
    %434 = vmatpush1.bf16.msra.mxu0 %v385
    %435 = vmatprep.subr.bf16.mxu0 0
    %436 = vmatpush1.bf16.msra.mxu0 %v386
    %437 = vmatprep.subr.bf16.mxu0 0
    %438 = vmatpush1.bf16.msra.mxu0 %v387
    %439 = vmatprep.subr.bf16.mxu0 0
    %440 = vmatpush1.bf16.msra.mxu0 %v388
    %441 = vmatprep.subr.bf16.mxu0 0
    %442 = vmatpush1.bf16.msra.mxu0 %v389
    %443 = vmatprep.subr.bf16.mxu0 0
    %444 = vmatpush1.bf16.msra.mxu0 %v390
    %445 = vmatprep.subr.bf16.mxu0 0
    %446 = vmatpush1.bf16.msra.mxu0 %v391
    %447 = vmatprep.subr.bf16.mxu0 0
    %448 = vmatpush1.bf16.msra.mxu0 %v392
    %449 = vmatprep.subr.bf16.mxu0 0
    %450 = vmatpush1.bf16.msra.mxu0 %v393
    %451 = vmatprep.subr.bf16.mxu0 0
    %452 = vmatpush1.bf16.msra.mxu0 %v394
    %453 = vmatprep.subr.bf16.mxu0 0
    %454 = vmatpush1.bf16.msra.mxu0 %v395
    %455 = vmatprep.subr.bf16.mxu0 0
    %456 = vmatpush1.bf16.msra.mxu0 %v396
    %457 = vmatprep.subr.bf16.mxu0 0
    %458 = vmatpush1.bf16.msra.mxu0 %v397
    %459 = vmatprep.subr.bf16.mxu0 0
    %460 = vmatpush1.bf16.msra.mxu0 %v398
    %461 = vmatprep.subr.bf16.mxu0 0
    %462 = vmatpush1.bf16.msra.mxu0 %v399
    %463 = vmatprep.subr.bf16.mxu0 0
    %464 = vmatpush1.bf16.msra.mxu0 %v400
    %465 = vmatprep.mubr.bf16.mxu0 %v232
    %466 = vmatmul.mubr.bf16.gmra.mrb[0].mxu0 %v231
    %v467 = vpop.f32.mrb[0].mxu0
    %v468 = vadd.f32 %v287, %v467
    %v469 = vpop.f32.mrb[0].mxu0
    %v470 = vpop.f32.mrb[0].mxu0
    %v471 = vadd.f32 %v287, %v470
    %v472 = vpop.f32.mrb[0].mxu0
    %473 = vdwg.mxu0
    %474 = vmatprep.subr.bf16.mxu0 0
    %475 = vmatpush1.bf16.msra.mxu0 %v401
    %476 = vmatprep.subr.bf16.mxu0 0
    %477 = vmatpush1.bf16.msra.mxu0 %v402
    %478 = vmatprep.subr.bf16.mxu0 0
    %479 = vmatpush1.bf16.msra.mxu0 %v403
    %480 = vmatprep.subr.bf16.mxu0 0
    %481 = vmatpush1.bf16.msra.mxu0 %v404
    %482 = vmatprep.subr.bf16.mxu0 0
    %483 = vmatpush1.bf16.msra.mxu0 %v405
    %484 = vmatprep.subr.bf16.mxu0 0
    %485 = vmatpush1.bf16.msra.mxu0 %v406
    %486 = vmatprep.subr.bf16.mxu0 0
    %487 = vmatpush1.bf16.msra.mxu0 %v407
    %488 = vmatprep.subr.bf16.mxu0 0
    %489 = vmatpush1.bf16.msra.mxu0 %v408
    %490 = vmatprep.subr.bf16.mxu0 0
    %491 = vmatpush1.bf16.msra.mxu0 0
    %492 = vmatprep.subr.bf16.mxu0 0
    %493 = vmatpush1.bf16.msra.mxu0 0
    %494 = vmatprep.subr.bf16.mxu0 0
    %495 = vmatpush1.bf16.msra.mxu0 0
    %496 = vmatprep.subr.bf16.mxu0 0
    %497 = vmatpush1.bf16.msra.mxu0 0
    %498 = vmatprep.subr.bf16.mxu0 0
    %499 = vmatpush1.bf16.msra.mxu0 0
    %500 = vmatprep.subr.bf16.mxu0 0
    %501 = vmatpush1.bf16.msra.mxu0 0
    %502 = vmatprep.subr.bf16.mxu0 0
    %503 = vmatpush1.bf16.msra.mxu0 0
    %504 = vmatprep.subr.bf16.mxu0 0
    %505 = vmatpush1.bf16.msra.mxu0 0
    %506 = vmatprep.mubr.bf16.mxu0 0
    %507 = vmatmul.mubr.bf16.gmra.mrb[0].mxu0 %v233
    %v508 = vpop.f32.mrb[0].mxu0
    %v509 = vadd.f32 %v468, %v508
    %v510 = vpop.f32.mrb[0].mxu0
    %v511 = vpop.f32.mrb[0].mxu0
    %v512 = vadd.f32 %v471, %v511
    %v513 = vpop.f32.mrb[0].mxu0
    %514 = vdwg.mxu0
    %s515 = smul.u32 0, 16
    %v516 = vlaneseq
    %v517 = vshrl.u32 %v516, 7
    %v518 = vadd.s32 %v517, 8
    %v519 = vstv %s515
    %v520 = vadd.s32 %v519, %v517
    %v521 = vadd.s32 %v519, %v518
    %vm522 = vcmp.lt.s32.totalorder %v520, 12
    %vm523 = vcmp.lt.s32.totalorder %v521, 12
    %v524 = vsel %vm522, %v509, 0.0
    %v525 = vsel %vm523, %v512, 0.0
    %526 = vst [vmem:[#allocation12] sm:$0xff] %v524
    %527 = vst [vmem:[#allocation12 + $0x8] sm:$0xff] %v525
    %vm528 = vcmp.gt.f32.partialorder %v524, 0.0
    %vm529 = vcmp.gt.f32.partialorder %v525, 0.0
    %v530 = vmul.f32 %v524, 0.01
    %v531 = vmul.f32 %v525, 0.01
    %v532 = vsel %vm528, %v524, %v530
    %v533 = vsel %vm529, %v525, %v531
    %v534 = vpack.c.bf16 %v533, %v532
    %v536 = vunpack.c.l.b16 %v534
    %v537 = vunpack.c.h.b16 %v534
    %v538 = vpack.c.b16 %v536, %v536
    %v539 = vpack.c.b16 %v537, %v537
    %542 = vst [vmem:[#allocation13] sm:$0xf] %v538
    %543 = vst [vmem:[#allocation13 + $0x4] sm:$0xf] %v539
    // Predicated region
    $region50: #{tpu_custom_call.1} parent=1 // pred_check
      _
    $region51: #{tpu_custom_call.1} parent=1 // pred_check_branch
      %545 = sbr.rel (0) target = $region53
    $region52: #{tpu_custom_call.1} parent=1 // pred_region
      %s547 = ssub.s32 256, 256
      %548 = vsyncadd [#allocation5], %s547
      %s549 = sshll.u32 [#allocation12], 4
      %s550 = int_to_ptr.vmem [resolvable:$true] %s549
      %555 = dma.vmem_to_hbm [thread:$0]  %s550, 256, %s7, [#allocation5], 128, 128, 8
    $region53: #{tpu_custom_call.1} parent=1 // pred_fallthru
      _
    // Predicated region
    $region54: #{tpu_custom_call.1} parent=1 // pred_check
      _
    $region55: #{tpu_custom_call.1} parent=1 // pred_check_branch
      %557 = sbr.rel (0) target = $region57
    $region56: #{tpu_custom_call.1} parent=1 // pred_region
      %s559 = ssub.s32 128, 128
      %560 = vsyncadd [#allocation14], %s559
      %s561 = sshll.u32 [#allocation13], 4
      %s562 = int_to_ptr.vmem [resolvable:$true] %s561
      %567 = dma.vmem_to_hbm [thread:$0]  %s562, 128, %s8, [#allocation14], 64, 64, 4
    $region57: #{tpu_custom_call.1} parent=1 // pred_fallthru
      _
    // Predicated region
    $region58: #{tpu_custom_call.1} parent=1 // pred_check
      _
    $region59: #{tpu_custom_call.1} parent=1 // pred_check_branch
      %569 = sbr.rel (0) target = $region61
    $region60: #{tpu_custom_call.1} parent=1 // pred_region
      %570 = dma.done [#allocation5], 256
    $region61: #{tpu_custom_call.1} parent=1 // pred_fallthru
      _
    // Predicated region
    $region62: #{tpu_custom_call.1} parent=1 // pred_check
      _
    $region63: #{tpu_custom_call.1} parent=1 // pred_check_branch
      %572 = sbr.rel (0) target = $region65
    $region64: #{tpu_custom_call.1} parent=1 // pred_region
      %573 = dma.done [#allocation14], 128
    $region65: #{tpu_custom_call.1} parent=1 // pred_fallthru
      _
    %574 = vsyncpa [#allocation4], 1
    %575 = vsyncpa [#allocation7], 1
    %576 = vsyncpa [#allocation10], 1
    %577 = vsyncpa [#allocation5], 1
    %578 = vsyncpa [#allocation14], 1

</llo_original>
